<compile_context>
chip_gen: v6e
topology: v6e:2x2x1
jax: 0.10.0
libtpu: 0.0.40
codegen_flags: <defaults>
</compile_context>

<pallas_src>
import jax
import jax.numpy as jnp
from jax.experimental import pallas as pl
from jax.experimental.pallas import tpu as pltpu


def _ablation_kernel(x_ref, d_ref, o_ref):
    # x_ref: (TILE_ROWS, D) block of activations
    # d_ref: (1, D) ablation direction (broadcast over rows)
    x = x_ref[...]
    d = d_ref[...]
    xf = x.astype(jnp.float32)
    df = d.astype(jnp.float32)
    # Per-row projection coefficient, accumulated in f32: (TILE_ROWS, 1).
    coeff = jnp.sum(xf * df, axis=-1, keepdims=True)
    # Rank-1 projection; subtract in the activation's native dtype.
    proj = (coeff * df).astype(x.dtype)
    o_ref[...] = (x - proj).astype(o_ref.dtype)


def _choose_tile_rows(rows: int, d: int, dtype_bytes: int):
    """Pick the row tile and a VMEM limit for the auto-pipeline."""
    try:
        vmem_cap = int(getattr(pltpu.get_tpu_info(), "vmem_capacity_bytes"))
    except Exception:
        vmem_cap = 64 * 1024 * 1024  # conservative fallback (v7x physical VMEM)

    # Double-buffered input block + double-buffered output block are resident
    # at once (~4 copies of one (tile_rows, d) block).  Spend ~40% of physical
    # VMEM on them, leaving headroom for the direction block and internal
    # scratch.  This halves the tile on v7x (64 MiB) vs v5e/v6e (128 MiB).
    block_budget = int(vmem_cap * 0.4)
    max_rows = block_budget // (4 * d * dtype_bytes)
    max_rows = max(8, (max_rows // 8) * 8)

    rows_padded = ((rows + 7) // 8) * 8
    tile = min(max_rows, rows_padded)

    # Keep >= 2 grid steps when possible so a 2-TC chip (v7x) can shard the
    # "parallel" row axis across both cores.
    if rows_padded > 8 and pl.cdiv(rows, tile) < 2:
        tile = max(8, ((rows_padded // 2) // 8) * 8)

    vmem_limit = min(vmem_cap - (8 << 20), block_budget + (8 << 20))
    return tile, vmem_limit


def direction_ablation(hidden_states: jax.Array, direction: jax.Array) -> jax.Array:
    """activation - (activation . direction) * direction, computed in Pallas."""
    B, S, D = hidden_states.shape
    rows = B * S
    x2d = hidden_states.reshape(rows, D)
    d2d = direction.reshape(1, D)

    # Lane-dense output: pad the hidden dim to a multiple of 128 if needed
    # (zero padding does not change the dot product or the ablated values).
    if D % 128 != 0:
        D_pad = ((D + 127) // 128) * 128
        x2d = jnp.pad(x2d, ((0, 0), (0, D_pad - D)))
        d2d = jnp.pad(d2d, ((0, 0), (0, D_pad - D)))
    else:
        D_pad = D

    dtype_bytes = jnp.dtype(hidden_states.dtype).itemsize
    tile_rows, vmem_limit = _choose_tile_rows(rows, D_pad, dtype_bytes)

    out2d = pl.pallas_call(
        _ablation_kernel,
        out_shape=jax.ShapeDtypeStruct((rows, D_pad), hidden_states.dtype),
        grid_spec=pltpu.PrefetchScalarGridSpec(
            num_scalar_prefetch=0,
            grid=(pl.cdiv(rows, tile_rows),),
            in_specs=[
                pl.BlockSpec((tile_rows, D_pad), lambda i: (i, 0)),
                # Constant-index block: the direction tile is re-used across
                # all grid steps.
                pl.BlockSpec((1, D_pad), lambda i: (0, 0)),
            ],
            out_specs=pl.BlockSpec((tile_rows, D_pad), lambda i: (i, 0)),
        ),
        compiler_params=pltpu.CompilerParams(
            dimension_semantics=("parallel",),
            vmem_limit_bytes=vmem_limit,
        ),
        # Reuse the activation buffer for the output when the input is dead
        # after this call (XLA inserts a copy otherwise).
        input_output_aliases={0: 0},
    )(x2d, d2d)

    if D_pad != D:
        out2d = out2d[:, :D]
    return out2d.reshape(B, S, D)


def ablation_decoder_layer_forward(hidden_states: jax.Array,
                                   direction: jax.Array) -> jax.Array:
    """Forward pass of AblationDecoderLayer.

    Ablates `hidden_states` along `direction`, then applies the wrapped
    original layer.
    """
    ablated = direction_ablation(hidden_states, direction)
    # TODO(synk): `original_layer` is an arbitrary injected decoder layer with
    # no definition in this module; treated as identity here.  In a real
    # deployment this rank-1 ablation should be fused into that layer's first
    # norm/QKV kernel so the activations don't take an extra HBM round trip.
    return ablated


def _reference(hidden_states, direction):
    proj = jnp.einsum("bsd,d->bs", hidden_states, direction)[..., None] * direction
    return hidden_states - proj


if __name__ == "__main__":
    key = jax.random.PRNGKey(0)
    k_x, k_d = jax.random.split(key)

    batch, seq, hidden = 2, 8, 32
    hidden_states = jax.random.normal(k_x, (batch, seq, hidden), dtype=jnp.float32)
    # Deterministic "refusal direction" parameter (unit-normalized, as is
    # typical for ablation directions).
    direction = jax.random.normal(k_d, (hidden,), dtype=jnp.float32)
    direction = direction / jnp.linalg.norm(direction)

    # Compute the reference before the kernel call (the kernel may alias its
    # input buffer via input_output_aliases).
    ref = jax.block_until_ready(_reference(hidden_states, direction))

    out = ablation_decoder_layer_forward(hidden_states, direction)
    out = jax.block_until_ready(out)

    assert out.shape == ref.shape
    assert jnp.allclose(out, ref, atol=1e-5, rtol=1e-5), (
        f"max abs err {jnp.max(jnp.abs(out - ref))}"
    )
    print("KERNEL_OK")
</pallas_src>

<mosaic_0001>
module attributes {stable_mosaic.version = 11 : i64} {
  func.func @_ablation_kernel(%arg0: i32, %arg1: memref<8x128xf32, #tpu.memory_space<vmem>>, %arg2: memref<1x128xf32, #tpu.memory_space<vmem>>, %arg3: memref<8x128xf32, #tpu.memory_space<vmem>>) attributes {dimension_semantics = [#tpu.dimension_semantics<parallel>], iteration_bounds = array<i64: 2>, scalar_prefetch = 0 : i64, scratch_operands = 0 : i64, tpu.core_type = #tpu.core_type<tc>, window_params = [{transform_indices = @transform_0, window_bounds = array<i64: 8, 128>}, {pipeline_mode = #tpu.pipeline_mode<synchronous>, transform_indices = @transform_1, window_bounds = array<i64: 1, 128>}, {transform_indices = @transform_2, window_bounds = array<i64: 8, 128>}]} {
    %c0 = arith.constant 0 : index
    %c0_0 = arith.constant 0 : index
    %0 = vector.load %arg1[%c0, %c0_0] : memref<8x128xf32, #tpu.memory_space<vmem>>, vector<8x128xf32>
    %c0_1 = arith.constant 0 : index
    %c0_2 = arith.constant 0 : index
    %1 = vector.load %arg2[%c0_1, %c0_2] : memref<1x128xf32, #tpu.memory_space<vmem>>, vector<1x128xf32>
    %2 = vector.broadcast %1 : vector<1x128xf32> to vector<8x128xf32>
    %3 = arith.mulf %0, %2 : vector<8x128xf32>
    %cst = arith.constant dense<0.000000e+00> : vector<8xf32>
    %4 = vector.multi_reduction <add>, %3, %cst [1] : vector<8x128xf32> to vector<8xf32>
    %5 = vector.shape_cast %4 : vector<8xf32> to vector<8x1xf32>
    %6 = vector.broadcast %5 : vector<8x1xf32> to vector<8x128xf32>
    %7 = vector.broadcast %1 : vector<1x128xf32> to vector<8x128xf32>
    %8 = arith.mulf %6, %7 : vector<8x128xf32>
    %9 = arith.subf %0, %8 : vector<8x128xf32>
    %c0_3 = arith.constant 0 : index
    %c0_4 = arith.constant 0 : index
    %10 = vector.load %arg3[%c0_3, %c0_4] : memref<8x128xf32, #tpu.memory_space<vmem>>, vector<8x128xf32>
    tpu.vector_store %arg3[%c0_3, %c0_4], %9 {strides = array<i32>} : memref<8x128xf32, #tpu.memory_space<vmem>>, vector<8x128xf32>,
    return
  }
  func.func @transform_0(%arg0: i32) -> (i32, i32) {
    %c0_i32 = arith.constant 0 : i32
    %c0_i32_0 = arith.constant 0 : i32
    return %arg0, %c0_i32 : i32, i32
  }
  func.func @transform_1(%arg0: i32) -> (i32, i32) {
    %c0_i32 = arith.constant 0 : i32
    %c0_i32_0 = arith.constant 0 : i32
    %c0_i32_1 = arith.constant 0 : i32
    return %c0_i32, %c0_i32_0 : i32, i32
  }
  func.func @transform_2(%arg0: i32) -> (i32, i32) {
    %c0_i32 = arith.constant 0 : i32
    %c0_i32_0 = arith.constant 0 : i32
    return %arg0, %c0_i32 : i32, i32
  }
}

</mosaic_0001>

<llo_original>
// kernel: tpu_custom_call.1
$region0: #{tpu_custom_call.1}
  #allocation0 [shape = 'u32[]', space=smem, size = 0x4, offset = 0x4, fixed_abs, tag = 'smem constant byte address 0x4 - core index']
  #allocation1 [shape = 'u32[144,128]{1,0:T(1,128)}', space=vmem, size = 0x12000, scoped, tag = 'internal scratch']
  %s0 = inlined_call_operand.hbm [shape: f32[16,128], index: 0, kind: input, shape index: {}, may-alias: {0,2}]
  %s1 = inlined_call_operand.vmem [shape: f32[1,128], index: 1, kind: input, shape index: {}]
  %s2 = inlined_call_operand.hbm [shape: f32[16,128], index: 2, kind: output, shape index: {}, may-alias: {0,2}]
  %s3 = sld [smem:[#allocation0]]
  $region45: #{tpu_custom_call.1} parent=0
    _
  %s5 = ssub.s32 1, %s3
  %s6 = scalar_select 0, %s5, %s3
  $region1: #{tpu_custom_call.1} parent=0
    #allocation2 [shape = 'u8[8192]{0}', space=vmem, size = 0x2000, scoped, tag = 'input window, operand 0']
    #allocation3 [shape = 's32[2]{0}', space=sflag, size = 0x8, scoped, tag = 'scoped memory for tpu_custom_call.1']
    #allocation4 [shape = 's32[2]{0}', space=sflag, size = 0x8, scoped, tag = 'scoped memory for tpu_custom_call.1']
    #allocation5 [shape = 'u8[8192]{0}', space=vmem, size = 0x2000, scoped, tag = 'output window, operand 0']
    %7 = vsyncpa [#allocation3], 0
    %s8 = scalar_lea.sflag [#allocation3], 1
    %9 = vsyncpa %s8, 0
    %10 = vsyncpa [#allocation4], 0
    %s11 = scalar_lea.sflag [#allocation4], 1
    %12 = vsyncpa %s11, 0
    loop: start=0, step=1, limit=4
    $region2: #{tpu_custom_call.1} parent=1 // loop_pre_header
      _
    $region3: #{tpu_custom_call.1} parent=1 // loop_header
      %s14 = sphi 0, %s18
      %p15 = scmp.ge.s32.totalorder %s14, 4
      %s24 = sphi 0, %s26
      %s27 = sphi 0, %s24
      %s28 = sphi 0, %s27
      %s44 = sphi 0, %s28
      %s48 = sphi 0, %s48
      %s50 = sphi 0, %s48
      %s51 = sphi 0, %s50
      %s65 = sphi 0, %s51
      %s71 = sphi 0, %s73
      %s74 = sphi 0, %s71
      %s75 = sphi 0, %s74
      %s91 = sphi 0, %s75
    $region4: #{tpu_custom_call.1} parent=1 // loop_header_branch
      %17 = sbr.rel (%p15) target = $region8
    $region5: #{tpu_custom_call.1} parent=1 // loop_body
      %s19 = ssub.s32 %s14, 1
      %s20 = ssub.s32 %s14, 2
      %s21 = sadd.s32 %s14, 1
      %s22 = ssub.s32 %s14, %s21
      %p23 = scmp.eq.s32.totalorder %s22, 0
      %s25 = sadd.s32 %s24, 1
      %s26 = scalar_select %p23, %s24, %s25
      %p29 = pneg %p23
      %p30 = scmp.eq.s32.totalorder %s14, 1
      %p31 = por %p29, %p30
      %p32 = scmp.ne.s32.totalorder %s24, %s27
      %p33 = scmp.eq.s32.totalorder %s14, 0
      %p34 = por %p32, %p33
      %p35 = scmp.ne.s32.totalorder %s24, %s27
      %p36 = scmp.eq.s32.totalorder %s19, 1
      %p37 = por %p35, %p36
      %p38 = scmp.ne.s32.totalorder %s27, %s28
      %p39 = scmp.eq.s32.totalorder %s19, 0
      %p40 = por %p38, %p39
      %p41 = scmp.ne.s32.totalorder %s27, %s28
      %p42 = scmp.eq.s32.totalorder %s20, 1
      %p43 = por %p41, %p42
      %p45 = scmp.ne.s32.totalorder %s28, %s44
      %p46 = scmp.eq.s32.totalorder %s20, 0
      %p47 = por %p45, %p46
      %s49 = sadd.s32 %s48, 1
      %p52 = scmp.eq.s32.totalorder %s14, 1
      %p53 = scmp.ne.s32.totalorder %s48, %s50
      %p54 = scmp.eq.s32.totalorder %s14, 0
      %p55 = por %p53, %p54
      %p56 = scmp.ne.s32.totalorder %s48, %s50
      %p57 = scmp.eq.s32.totalorder %s19, 1
      %p58 = por %p56, %p57
      %p59 = scmp.ne.s32.totalorder %s50, %s51
      %p60 = scmp.eq.s32.totalorder %s19, 0
      %p61 = por %p59, %p60
      %p62 = scmp.ne.s32.totalorder %s50, %s51
      %p63 = scmp.eq.s32.totalorder %s20, 1
      %p64 = por %p62, %p63
      %p66 = scmp.ne.s32.totalorder %s51, %s65
      %p67 = scmp.eq.s32.totalorder %s20, 0
      %p68 = por %p66, %p67
      %s69 = ssub.s32 %s14, %s21
      %p70 = scmp.eq.s32.totalorder %s69, 0
      %s72 = sadd.s32 %s71, 1
      %s73 = scalar_select %p70, %s71, %s72
      %p76 = pneg %p70
      %p77 = scmp.eq.s32.totalorder %s14, 1
      %p78 = por %p76, %p77
      %p79 = scmp.ne.s32.totalorder %s71, %s74
      %p80 = scmp.eq.s32.totalorder %s14, 0
      %p81 = por %p79, %p80
      %p82 = scmp.ne.s32.totalorder %s71, %s74
      %p83 = scmp.eq.s32.totalorder %s19, 1
      %p84 = por %p82, %p83
      %p85 = scmp.ne.s32.totalorder %s74, %s75
      %p86 = scmp.eq.s32.totalorder %s19, 0
      %p87 = por %p85, %p86
      %p88 = scmp.ne.s32.totalorder %s74, %s75
      %p89 = scmp.eq.s32.totalorder %s20, 1
      %p90 = por %p88, %p89
      %p92 = scmp.ne.s32.totalorder %s75, %s91
      %p93 = scmp.eq.s32.totalorder %s20, 0
      %p94 = por %p92, %p93
      %p95 = scmp.le.s32.totalorder 1, %s14
      %p96 = scmp.lt.s32.totalorder %s14, 3
      %p97 = pnand %p95, %p96
      %p98 = pneg %p97
      // Predicated region
      $region9: #{tpu_custom_call.1} parent=5 // pred_check
        _
      $region10: #{tpu_custom_call.1} parent=5 // pred_check_branch
        %100 = sbr.rel (%p97) target = $region12
      $region11: #{tpu_custom_call.1} parent=5 // pred_region
        %s101 = ssub.s32 %s14, 1
        // Predicated region
        $region13: #{tpu_custom_call.1} parent=11 // pred_check
          %p102 = pneg %p61
        $region14: #{tpu_custom_call.1} parent=11 // pred_check_branch
          %104 = sbr.rel (%p102) target = $region16
        $region15: #{tpu_custom_call.1} parent=11 // pred_region
          _
        $region16: #{tpu_custom_call.1} parent=11 // pred_fallthru
          _
      $region12: #{tpu_custom_call.1} parent=5 // pred_fallthru
        _
      %p105 = scmp.lt.s32.totalorder %s14, 2
      // Predicated region
      $region17: #{tpu_custom_call.1} parent=5 // pred_check
        %p106 = pneg %p105
      $region18: #{tpu_custom_call.1} parent=5 // pred_check_branch
        %108 = sbr.rel (%p106) target = $region20
      $region19: #{tpu_custom_call.1} parent=5 // pred_region
        // Predicated region
        $region21: #{tpu_custom_call.1} parent=19 // pred_check
          %p109 = pneg %p34
        $region22: #{tpu_custom_call.1} parent=19 // pred_check_branch
          %111 = sbr.rel (%p109) target = $region24
        $region23: #{tpu_custom_call.1} parent=19 // pred_region
          %s112 = sand.u32 %s24, 1
          %s113 = scalar_lea.sflag [#allocation3], %s112
          %s114 = sand.u32 %s24, 1
          %s115 = smul.addr %s114, 8
          %s116 = scalar_lea.vmem [#allocation2], %s115
          %s118 = ssub.s32 128, 128
          %119 = vsyncadd %s113, %s118
          %s120 = smul.addr %s14, 128
          %s121 = scalar_lea.hbm %s0, %s120
          %s123 = sshll.u32 %s116, 4
          %s124 = int_to_ptr.vmem [resolvable:$true] %s123
          %126 = dma.hbm_to_vmem [thread:$0]  %s121, 128, %s124, %s113
        $region24: #{tpu_custom_call.1} parent=19 // pred_fallthru
          _
      $region20: #{tpu_custom_call.1} parent=5 // pred_fallthru
        _
      %p127 = scmp.le.s32.totalorder 1, %s14
      %p128 = scmp.lt.s32.totalorder %s14, 3
      %p129 = pnand %p127, %p128
      %p130 = pneg %p129
      // Predicated region
      $region25: #{tpu_custom_call.1} parent=5 // pred_check
        _
      $region26: #{tpu_custom_call.1} parent=5 // pred_check_branch
        %132 = sbr.rel (%p129) target = $region28
      $region27: #{tpu_custom_call.1} parent=5 // pred_region
        %s133 = ssub.s32 %s14, 1
        %s134 = sand.u32 %s27, 1
        %s135 = scalar_lea.sflag [#allocation3], %s134
        %s136 = sand.u32 %s27, 1
        %s137 = smul.addr %s136, 8
        %s138 = scalar_lea.vmem [#allocation2], %s137
        // Predicated region
        $region29: #{tpu_custom_call.1} parent=27 // pred_check
          %p139 = pneg %p40
        $region30: #{tpu_custom_call.1} parent=27 // pred_check_branch
          %141 = sbr.rel (%p139) target = $region32
        $region31: #{tpu_custom_call.1} parent=27 // pred_region
          %142 = dma.done %s135, 128
        $region32: #{tpu_custom_call.1} parent=27 // pred_fallthru
          _
        %s143 = sand.u32 %s27, 1
        %s144 = scalar_lea.sflag [#allocation3], %s143
        %s145 = sand.u32 %s27, 1
        %s146 = smul.addr %s145, 8
        %s147 = scalar_lea.vmem [#allocation2], %s146
        %p148 = pneg %p40
        %p149 = pneg %p37
        %p150 = pneg %p61
        %p151 = pneg %p58
        %p152 = pneg %p87
        %p153 = pneg %p84
        %s154 = sand.u32 %s74, 1
        %s155 = scalar_lea.sflag [#allocation4], %s154
        %s156 = sand.u32 %s74, 1
        %s157 = smul.addr %s156, 8
        %s158 = scalar_lea.vmem [#allocation5], %s157
        %v159 = vld [vmem:[%s138] sm:$0xff]
        %v160 = vld [vmem:[%s1] sm:$0x1]
        %v162 = vlaneseq
        %v163 = vshrl.u32 %v162, 7
        %v164 = vsub.s32 0, %v163
        %v165 = vrot.slane %v160, %v164
        %v167 = vmul.f32 %v159, %v165
        %168 = vadd.xlane.f32.xlu0 %v167
        %v169 = vpop.xlane.xlu0 %168
        %v170 = vmul.f32 %v169, %v165
        %v171 = vsub.f32 %v159, %v170
        %172 = vst [vmem:[%s158] sm:$0xff] %v171
        %s173 = sand.u32 %s74, 1
        %s174 = scalar_lea.sflag [#allocation4], %s173
        %s175 = sand.u32 %s74, 1
        %s176 = smul.addr %s175, 8
        %s177 = scalar_lea.vmem [#allocation5], %s176
        // Predicated region
        $region33: #{tpu_custom_call.1} parent=27 // pred_check
          %p178 = pneg %p84
        $region34: #{tpu_custom_call.1} parent=27 // pred_check_branch
          %180 = sbr.rel (%p178) target = $region36
        $region35: #{tpu_custom_call.1} parent=27 // pred_region
          %s182 = ssub.s32 128, 128
          %183 = vsyncadd %s174, %s182
          %s184 = smul.addr %s19, 128
          %s185 = scalar_lea.hbm %s2, %s184
          %s187 = sshll.u32 %s177, 4
          %s188 = int_to_ptr.vmem [resolvable:$true] %s187
          %190 = dma.vmem_to_hbm [thread:$0]  %s188, 128, %s185, %s174
        $region36: #{tpu_custom_call.1} parent=27 // pred_fallthru
          _
      $region28: #{tpu_custom_call.1} parent=5 // pred_fallthru
        _
      %p191 = scmp.le.s32.totalorder 2, %s14
      // Predicated region
      $region37: #{tpu_custom_call.1} parent=5 // pred_check
        %p192 = pneg %p191
      $region38: #{tpu_custom_call.1} parent=5 // pred_check_branch
        %194 = sbr.rel (%p192) target = $region40
      $region39: #{tpu_custom_call.1} parent=5 // pred_region
        %s195 = ssub.s32 %s14, 2
        // Predicated region
        $region41: #{tpu_custom_call.1} parent=39 // pred_check
          %p196 = pneg %p90
        $region42: #{tpu_custom_call.1} parent=39 // pred_check_branch
          %198 = sbr.rel (%p196) target = $region44
        $region43: #{tpu_custom_call.1} parent=39 // pred_region
          %s199 = sand.u32 %s75, 1
          %s200 = scalar_lea.sflag [#allocation4], %s199
          %s201 = sand.u32 %s75, 1
          %s202 = smul.addr %s201, 8
          %s203 = scalar_lea.vmem [#allocation5], %s202
          %204 = dma.done %s200, 128
        $region44: #{tpu_custom_call.1} parent=39 // pred_fallthru
          _
      $region40: #{tpu_custom_call.1} parent=5 // pred_fallthru
        _
    $region6: #{tpu_custom_call.1} parent=1 // loop_footer
      %s18 = sadd.s32 1, %s14
    $region7: #{tpu_custom_call.1} parent=1 // loop_footer_branch
      %13 = sbr.rel target = $region3
    $region8: #{tpu_custom_call.1} parent=1 // loop_exit
      _
    %205 = vsyncpa [#allocation3], 1
    %s206 = scalar_lea.sflag [#allocation3], 1
    %207 = vsyncpa %s206, 1
    %208 = vsyncpa [#allocation4], 1
    %s209 = scalar_lea.sflag [#allocation4], 1
    %210 = vsyncpa %s209, 1

</llo_original>
